<compile_context>
chip_gen: v5e
topology: v5e:2x2
jax: 0.10.0
libtpu: 0.0.40
codegen_flags: <defaults>
</compile_context>

<pallas_src>
import jax
import jax.numpy as jnp
from jax.experimental import pallas as pl
from jax.experimental.pallas import tpu as pltpu


def _awl_kernel(packed_ref, out_ref):
    # packed_ref: (2, 2*num) f32 VMEM tile.
    #   row 0 = [coef_0..coef_{n-1}, 1 ... 1]
    #   row 1 = [loss_0..loss_{n-1}, bias_0..bias_{n-1}]
    a = packed_ref[0:1, :]                 # (1, 2*num)
    b = packed_ref[1:2, :]                 # (1, 2*num)
    # Complete loss: sum(coef_i * loss_i) + sum(bias_i).  One VPU multiply over
    # the tile + one XLU reduce; reduce is over the logical shape only, so
    # padded lanes never enter the result.
    out_ref[0, 0] = jnp.sum(a * b)         # scalar -> SMEM output


def automatic_weighted_loss(params: jax.Array, losses: jax.Array) -> jax.Array:
    """params: (num,) f32, losses: (num,) f32 -> scalar f32 loss_sum."""
    params = params.astype(jnp.float32)
    losses = losses.astype(jnp.float32)
    # Params-only math stays in XLA (fuses away under jit; recomputed whenever
    # params change, so nothing here can go stale).
    p2 = params * params
    coef = 0.5 / p2                        # 0.5 / params^2
    bias = jnp.log1p(p2)                   # log(1 + params^2)
    row0 = jnp.concatenate([coef, jnp.ones_like(coef)])
    row1 = jnp.concatenate([losses, bias])
    packed = jnp.stack([row0, row1])       # (2, 2*num) f32

    out = pl.pallas_call(
        _awl_kernel,
        out_shape=jax.ShapeDtypeStruct((1, 1), jnp.float32),
        in_specs=[pl.BlockSpec(memory_space=pltpu.MemorySpace.VMEM)],
        out_specs=pl.BlockSpec(memory_space=pltpu.MemorySpace.SMEM),
    )(packed)
    return out.reshape(())


class AutomaticWeightedLoss:
    """JAX/Pallas port of the PyTorch AutomaticWeightedLoss module (forward only)."""

    def __init__(self, num: int = 2):
        self.num = num
        # torch.ones(num) parameter, fixed/deterministic here.
        # TODO(synk): params is a learnable nn.Parameter in PyTorch; no training here.
        self.params = jnp.ones((num,), dtype=jnp.float32)

    def __call__(self, *x):
        losses = jnp.stack([jnp.asarray(l, dtype=jnp.float32).reshape(()) for l in x])
        # params read at call time and passed as a runtime value (not cached).
        return automatic_weighted_loss(self.params, losses)


if __name__ == "__main__":
    key = jax.random.PRNGKey(0)
    num_tasks = 2
    # Two synthetic scalar task losses (deterministic).
    loss_vals = jax.random.uniform(key, (num_tasks,), dtype=jnp.float32) * 3.0

    awl = AutomaticWeightedLoss(num_tasks)

    # params is an explicit jit argument so a (future) learnable params never
    # becomes a stale trace constant; packing/coef/bias ops fuse away under jit.
    @jax.jit
    def step(params, l0, l1):
        losses = jnp.stack([l0, l1])
        return automatic_weighted_loss(params, losses)

    out = step(awl.params, loss_vals[0], loss_vals[1])
    out = jax.block_until_ready(out)

    # Class-API path (matches PyTorch usage awl(loss1, loss2)).
    out_cls = jax.block_until_ready(awl(loss_vals[0], loss_vals[1]))

    # Pure-JAX reference check (PyTorch formula).
    p = awl.params
    ref = jnp.sum(0.5 / (p ** 2) * loss_vals + jnp.log(1.0 + p ** 2))
    assert jnp.allclose(out, ref, rtol=1e-5, atol=1e-5), (out, ref)
    assert jnp.allclose(out_cls, ref, rtol=1e-5, atol=1e-5), (out_cls, ref)

    print("KERNEL_OK")
</pallas_src>

<mosaic_0001>
module attributes {stable_mosaic.version = 11 : i64} {
  func.func @_awl_kernel(%arg0: memref<2x4xf32, #tpu.memory_space<vmem>>, %arg1: memref<1x1xf32, #tpu.memory_space<smem>>) attributes {dimension_semantics = [], scalar_prefetch = 0 : i64, scratch_operands = 0 : i64, tpu.core_type = #tpu.core_type<tc>} {
    %c0 = arith.constant 0 : index
    %c0_0 = arith.constant 0 : index
    %0 = vector.load %arg0[%c0, %c0_0] : memref<2x4xf32, #tpu.memory_space<vmem>>, vector<1x4xf32>
    %c1 = arith.constant 1 : index
    %c0_1 = arith.constant 0 : index
    %1 = vector.load %arg0[%c1, %c0_1] : memref<2x4xf32, #tpu.memory_space<vmem>>, vector<1x4xf32>
    %2 = arith.mulf %0, %1 : vector<1x4xf32>
    %3 = vector.shape_cast %2 : vector<1x4xf32> to vector<1x1x4xf32>
    %cst = arith.constant dense<0.000000e+00> : vector<1xf32>
    %4 = vector.multi_reduction <add>, %3, %cst [1, 2] : vector<1x1x4xf32> to vector<1xf32>
    %5 = vector.shape_cast %4 : vector<1xf32> to vector<1x1x1xf32>
    %6 = vector.extract %5[0, 0, 0] : f32 from vector<1x1x1xf32>
    %c0_2 = arith.constant 0 : index
    %c0_3 = arith.constant 0 : index
    %7 = memref.load %arg1[%c0_2, %c0_3] : memref<1x1xf32, #tpu.memory_space<smem>>
    memref.store %6, %arg1[%c0_2, %c0_3] : memref<1x1xf32, #tpu.memory_space<smem>>
    return
  }
}

</mosaic_0001>

<llo_original>
// kernel: step.1
$region0: #{step.1}
  #allocation0 [shape = 'u32[]', space=smem, size = 0x4, offset = 0x4, fixed_abs, tag = 'smem constant byte address 0x4 - core index']
  #allocation1 [shape = 'u32[72,128]{1,0:T(1,128)}', space=vmem, size = 0x9000, scoped, tag = 'internal scratch']
  %s0 = inlined_call_operand.vmem [shape: f32[2,4], index: 0, kind: input, shape index: {}]
  %s1 = inlined_call_operand.hbm [shape: f32[1,1], index: 1, kind: output, shape index: {}]
  %s2 = sld [smem:[#allocation0]]
  $region14: #{step.1} parent=0
    _
  %s4 = ssub.s32 1, %s2
  %s5 = scalar_select 0, %s4, %s2
  $region1: #{step.1} parent=0
    #allocation2 [shape = 'u8[512]{0}', space=smem, size = 0x200, scoped, tag = 'output window, operand 0, single buffered']
    #allocation3 [shape = 's32[1]{0}', space=sflag, size = 0x4, scoped, tag = 'scoped memory for step.1']
    %6 = vsyncpa [#allocation3], 0
    // Predicated region
    $region2: #{step.1} parent=1 // pred_check
      _
    $region3: #{step.1} parent=1 // pred_check_branch
      %8 = sbr.rel (0) target = $region5
    $region4: #{step.1} parent=1 // pred_region
      _
    $region5: #{step.1} parent=1 // pred_fallthru
      _
    %v9 = vld [vmem:[%s0] sm:$0x1]
    %v10 = vld [vmem:[%s0 + $0x1] sm:$0x1]
    %v11 = vmul.f32 %v9, %v10
    %vm12 = vcmask 24576
    %v13 = vsel %vm12, %v11, 0.0
    %14 = vadd.xlane.f32.xlu0 %v13
    %v15 = vpop.xlane.xlu0 %14
    %v16 = vrot.slane %v15, 4
    %v17 = vadd.f32 %v15, %v16
    %v18 = vrot.slane %v17, 2
    %v19 = vadd.f32 %v17, %v18
    %v20 = vrot.slane %v19, 1
    %v21 = vadd.f32 %v19, %v20
    %s22 = vtos %v21
    %s23 = scalar_lea.smem [#allocation2], 0
    %24 = sst [smem:[%s23]] %s22
    // Predicated region
    $region6: #{step.1} parent=1 // pred_check
      _
    $region7: #{step.1} parent=1 // pred_check_branch
      %26 = sbr.rel (0) target = $region9
    $region8: #{step.1} parent=1 // pred_region
      %28 = vsyncadd [#allocation3], 0
      %s30 = sshll.u32 %s1, 4
      %s31 = int_to_ptr.hbm [resolvable:$true] %s30
      %33 = dma.smem_to_hbm [#allocation2], 16, %s31, [#allocation3]
    $region9: #{step.1} parent=1 // pred_fallthru
      _
    // Predicated region
    $region10: #{step.1} parent=1 // pred_check
      _
    $region11: #{step.1} parent=1 // pred_check_branch
      %35 = sbr.rel (0) target = $region13
    $region12: #{step.1} parent=1 // pred_region
      %37 = dma.done [#allocation3], 16
    $region13: #{step.1} parent=1 // pred_fallthru
      _
    %38 = sfence
    %39 = vsyncpa [#allocation3], 1

</llo_original>
